<compile_context>
chip_gen: v5e
topology: v5e:2x2
jax: 0.10.0
libtpu: 0.0.40
codegen_flags: <defaults>
</compile_context>

<pallas_src>
import jax
import jax.numpy as jnp
from jax.experimental import pallas as pl
from jax.experimental.pallas import tpu as pltpu


def _round_up(x: int, m: int) -> int:
    return (x + m - 1) // m * m


def _routes_encoder_kernel(idx_ref, graph_ref, w1_ref, b1_ref, w2_ref, b2_ref, out_ref):
    # idx_ref   : (TR*L, 1) int32  — route indices for this tile (column layout: lane-broadcast)
    # graph_ref : (N_pad, D_pad) f32
    # w1/b1/w2/b2 : padded weights
    # out_ref   : (TR, H_pad) f32
    TRL = idx_ref.shape[0]
    TR = out_ref.shape[0]
    L = TRL // TR
    N_pad = graph_ref.shape[0]
    D_pad = graph_ref.shape[1]

    # ---- one-hot MXU gather: rows = onehot @ graph_embedding ----
    idx_col = idx_ref[...]                                            # (TRL, 1) int32
    lane_iota = jax.lax.broadcasted_iota(jnp.int32, (TRL, N_pad), 1)  # (TRL, N_pad)
    onehot = (lane_iota == idx_col).astype(jnp.float32)               # exact 0/1 mask
    gathered = jnp.dot(onehot, graph_ref[...],
                       preferred_element_type=jnp.float32)            # (TRL, D_pad)

    # ---- max over route length (torch.max(..., dim=1)[0]) ----
    # reshape keeps the lane dim intact; axis=1 is a native sublane reduction.
    x = jnp.max(gathered.reshape(TR, L, D_pad), axis=1)               # (TR, D_pad)

    # ---- LinearBlockChain: (Linear + ReLU) x 2 ----
    h = jnp.dot(x, w1_ref[...], preferred_element_type=jnp.float32) + b1_ref[...]
    h = jnp.maximum(h, 0.0)
    h = jnp.dot(h, w2_ref[...], preferred_element_type=jnp.float32) + b2_ref[...]
    h = jnp.maximum(h, 0.0)

    out_ref[...] = h.astype(out_ref.dtype)


def routes_encoder(graph_embedding, locations_idx, w1, b1, w2, b2, *, tile_r=None):
    """graph_embedding: [N, D] f32; locations_idx: [R, L] i32; 2-block Linear+ReLU chain."""
    N, D = graph_embedding.shape
    R, L = locations_idx.shape
    H = w2.shape[1]

    # lane/sublane padding (zero padding keeps results exact; padded rows/cols sliced off)
    N_pad = _round_up(N, 128)
    D_pad = _round_up(D, 128)
    H_pad = _round_up(H, 128)
    if tile_r is None:
        tile_r = min(128, _round_up(R, 8))
    R_pad = _round_up(R, tile_r)

    idx = jnp.clip(locations_idx.astype(jnp.int32), 0, N - 1)         # no OOB reads in kernel
    idx = jnp.pad(idx, ((0, R_pad - R), (0, 0)))                      # padded routes -> row 0
    idx = idx.reshape(R_pad * L, 1)                                   # column layout for compare

    g = jnp.pad(graph_embedding.astype(jnp.float32), ((0, N_pad - N), (0, D_pad - D)))
    w1p = jnp.pad(w1.astype(jnp.float32), ((0, D_pad - D), (0, H_pad - H)))
    b1p = jnp.pad(b1.reshape(1, -1).astype(jnp.float32), ((0, 0), (0, H_pad - H)))
    w2p = jnp.pad(w2.astype(jnp.float32), ((0, H_pad - H), (0, H_pad - H)))
    b2p = jnp.pad(b2.reshape(1, -1).astype(jnp.float32), ((0, 0), (0, H_pad - H)))

    grid = (R_pad // tile_r,)
    out = pl.pallas_call(
        _routes_encoder_kernel,
        out_shape=jax.ShapeDtypeStruct((R_pad, H_pad), jnp.float32),
        grid_spec=pltpu.PrefetchScalarGridSpec(
            num_scalar_prefetch=0,
            grid=grid,
            in_specs=[
                pl.BlockSpec((tile_r * L, 1), lambda i: (i, 0)),      # route indices (tiled)
                pl.BlockSpec((N_pad, D_pad), lambda i: (0, 0)),       # graph table (resident)
                pl.BlockSpec((D_pad, H_pad), lambda i: (0, 0)),       # w1
                pl.BlockSpec((1, H_pad), lambda i: (0, 0)),           # b1
                pl.BlockSpec((H_pad, H_pad), lambda i: (0, 0)),       # w2
                pl.BlockSpec((1, H_pad), lambda i: (0, 0)),           # b2
            ],
            out_specs=pl.BlockSpec((tile_r, H_pad), lambda i: (i, 0)),
        ),
        compiler_params=pltpu.CompilerParams(
            dimension_semantics=("parallel",)),
    )(idx, g, w1p, b1p, w2p, b2p)

    return out[:R, :H]


def _reference(graph_embedding, locations_idx, w1, b1, w2, b2):
    routes = graph_embedding[locations_idx]          # (R, L, D) gather
    x = jnp.max(routes, axis=1)                      # (R, D)
    h = jnp.maximum(x @ w1 + b1, 0.0)
    h = jnp.maximum(h @ w2 + b2, 0.0)
    return h


if __name__ == "__main__":
    # small shapes consistent with the module
    N = 16            # number of locations in graph_embedding
    D = 32            # graph_embedding_dim
    H = 32            # routes_embedding_dim
    R = 4             # number of routes
    L = 8             # locations per route (torch.cat in the reference requires equal lengths)
    # linear_blocks_number = 2

    key = jax.random.PRNGKey(0)
    k_g, k_i, k_w1, k_b1, k_w2, k_b2 = jax.random.split(key, 6)

    graph_embedding = jax.random.normal(k_g, (N, D), dtype=jnp.float32)
    locations_idx = jax.random.randint(k_i, (R, L), 0, N, dtype=jnp.int32)

    # deterministic parameter init (synthetic, not a checkpoint load)
    w1 = jax.random.normal(k_w1, (D, H), dtype=jnp.float32) * (1.0 / jnp.sqrt(D))
    b1 = jax.random.normal(k_b1, (H,), dtype=jnp.float32) * 0.01
    w2 = jax.random.normal(k_w2, (H, H), dtype=jnp.float32) * (1.0 / jnp.sqrt(H))
    b2 = jax.random.normal(k_b2, (H,), dtype=jnp.float32) * 0.01

    out = routes_encoder(graph_embedding, locations_idx, w1, b1, w2, b2)
    out = jax.block_until_ready(out)

    ref = _reference(graph_embedding, locations_idx, w1, b1, w2, b2)
    assert out.shape == (R, H)
    assert jnp.allclose(out, ref, atol=1e-5, rtol=1e-5), "mismatch vs reference"

    print("KERNEL_OK")
</pallas_src>

<mosaic_0001>
module attributes {stable_mosaic.version = 11 : i64} {
  func.func @_routes_encoder_kernel(%arg0: i32, %arg1: memref<64x1xi32, #tpu.memory_space<vmem>>, %arg2: memref<128x128xf32, #tpu.memory_space<vmem>>, %arg3: memref<128x128xf32, #tpu.memory_space<vmem>>, %arg4: memref<1x128xf32, #tpu.memory_space<vmem>>, %arg5: memref<128x128xf32, #tpu.memory_space<vmem>>, %arg6: memref<1x128xf32, #tpu.memory_space<vmem>>, %arg7: memref<8x128xf32, #tpu.memory_space<vmem>>) attributes {dimension_semantics = [#tpu.dimension_semantics<parallel>], iteration_bounds = array<i64: 1>, scalar_prefetch = 0 : i64, scratch_operands = 0 : i64, tpu.core_type = #tpu.core_type<tc>, window_params = [{transform_indices = @transform_0, window_bounds = array<i64: 64, 1>}, {pipeline_mode = #tpu.pipeline_mode<synchronous>, transform_indices = @transform_1, window_bounds = array<i64: 128, 128>}, {pipeline_mode = #tpu.pipeline_mode<synchronous>, transform_indices = @transform_2, window_bounds = array<i64: 128, 128>}, {pipeline_mode = #tpu.pipeline_mode<synchronous>, transform_indices = @transform_3, window_bounds = array<i64: 1, 128>}, {pipeline_mode = #tpu.pipeline_mode<synchronous>, transform_indices = @transform_4, window_bounds = array<i64: 128, 128>}, {pipeline_mode = #tpu.pipeline_mode<synchronous>, transform_indices = @transform_5, window_bounds = array<i64: 1, 128>}, {transform_indices = @transform_6, window_bounds = array<i64: 8, 128>}]} {
    %c0 = arith.constant 0 : index
    %c0_0 = arith.constant 0 : index
    %0 = vector.load %arg1[%c0, %c0_0] : memref<64x1xi32, #tpu.memory_space<vmem>>, vector<64x1xi32>
    %1 = tpu.iota {dimensions = array<i32: 1>} : vector<64x128xi32>
    %2 = vector.broadcast %0 : vector<64x1xi32> to vector<64x128xi32>
    %3 = arith.cmpi eq, %1, %2 : vector<64x128xi32>
    %4 = arith.extui %3 : vector<64x128xi1> to vector<64x128xi32>
    %5 = arith.sitofp %4 : vector<64x128xi32> to vector<64x128xf32>
    %c0_1 = arith.constant 0 : index
    %c0_2 = arith.constant 0 : index
    %6 = vector.load %arg2[%c0_1, %c0_2] : memref<128x128xf32, #tpu.memory_space<vmem>>, vector<128x128xf32>
    %cst = arith.constant dense<0.000000e+00> : vector<64x128xf32>
    %7 = tpu.matmul %5, %6, %cst {dimension_numbers = #tpu.dot_dimension_numbers<[1], [0], [0], [1], [0, 0, 1, 1], [], []>} : vector<64x128xf32>, vector<128x128xf32>, vector<64x128xf32> -> vector<64x128xf32>
    %8 = vector.shape_cast %7 : vector<64x128xf32> to vector<8x8x128xf32>
    %cst_3 = arith.constant dense<0xFF800000> : vector<8x128xf32>
    %9 = vector.multi_reduction <maximumf>, %8, %cst_3 [1] : vector<8x8x128xf32> to vector<8x128xf32>
    %c0_4 = arith.constant 0 : index
    %c0_5 = arith.constant 0 : index
    %10 = vector.load %arg3[%c0_4, %c0_5] : memref<128x128xf32, #tpu.memory_space<vmem>>, vector<128x128xf32>
    %cst_6 = arith.constant dense<0.000000e+00> : vector<8x128xf32>
    %11 = tpu.matmul %9, %10, %cst_6 {dimension_numbers = #tpu.dot_dimension_numbers<[1], [0], [0], [1], [0, 0, 1, 1], [], []>} : vector<8x128xf32>, vector<128x128xf32>, vector<8x128xf32> -> vector<8x128xf32>
    %c0_7 = arith.constant 0 : index
    %c0_8 = arith.constant 0 : index
    %12 = vector.load %arg4[%c0_7, %c0_8] : memref<1x128xf32, #tpu.memory_space<vmem>>, vector<1x128xf32>
    %13 = vector.broadcast %12 : vector<1x128xf32> to vector<8x128xf32>
    %14 = arith.addf %11, %13 : vector<8x128xf32>
    %cst_9 = arith.constant 0.000000e+00 : f32
    %15 = vector.broadcast %cst_9 : f32 to vector<8x128xf32>
    %16 = arith.maximumf %14, %15 : vector<8x128xf32>
    %c0_10 = arith.constant 0 : index
    %c0_11 = arith.constant 0 : index
    %17 = vector.load %arg5[%c0_10, %c0_11] : memref<128x128xf32, #tpu.memory_space<vmem>>, vector<128x128xf32>
    %cst_12 = arith.constant dense<0.000000e+00> : vector<8x128xf32>
    %18 = tpu.matmul %16, %17, %cst_12 {dimension_numbers = #tpu.dot_dimension_numbers<[1], [0], [0], [1], [0, 0, 1, 1], [], []>} : vector<8x128xf32>, vector<128x128xf32>, vector<8x128xf32> -> vector<8x128xf32>
    %c0_13 = arith.constant 0 : index
    %c0_14 = arith.constant 0 : index
    %19 = vector.load %arg6[%c0_13, %c0_14] : memref<1x128xf32, #tpu.memory_space<vmem>>, vector<1x128xf32>
    %20 = vector.broadcast %19 : vector<1x128xf32> to vector<8x128xf32>
    %21 = arith.addf %18, %20 : vector<8x128xf32>
    %cst_15 = arith.constant 0.000000e+00 : f32
    %22 = vector.broadcast %cst_15 : f32 to vector<8x128xf32>
    %23 = arith.maximumf %21, %22 : vector<8x128xf32>
    %c0_16 = arith.constant 0 : index
    %c0_17 = arith.constant 0 : index
    %24 = vector.load %arg7[%c0_16, %c0_17] : memref<8x128xf32, #tpu.memory_space<vmem>>, vector<8x128xf32>
    tpu.vector_store %arg7[%c0_16, %c0_17], %23 {strides = array<i32>} : memref<8x128xf32, #tpu.memory_space<vmem>>, vector<8x128xf32>,
    return
  }
  func.func @transform_0(%arg0: i32) -> (i32, i32) {
    %c0_i32 = arith.constant 0 : i32
    %c0_i32_0 = arith.constant 0 : i32
    return %arg0, %c0_i32 : i32, i32
  }
  func.func @transform_1(%arg0: i32) -> (i32, i32) {
    %c0_i32 = arith.constant 0 : i32
    %c0_i32_0 = arith.constant 0 : i32
    %c0_i32_1 = arith.constant 0 : i32
    return %c0_i32, %c0_i32_0 : i32, i32
  }
  func.func @transform_2(%arg0: i32) -> (i32, i32) {
    %c0_i32 = arith.constant 0 : i32
    %c0_i32_0 = arith.constant 0 : i32
    %c0_i32_1 = arith.constant 0 : i32
    return %c0_i32, %c0_i32_0 : i32, i32
  }
  func.func @transform_3(%arg0: i32) -> (i32, i32) {
    %c0_i32 = arith.constant 0 : i32
    %c0_i32_0 = arith.constant 0 : i32
    %c0_i32_1 = arith.constant 0 : i32
    return %c0_i32, %c0_i32_0 : i32, i32
  }
  func.func @transform_4(%arg0: i32) -> (i32, i32) {
    %c0_i32 = arith.constant 0 : i32
    %c0_i32_0 = arith.constant 0 : i32
    %c0_i32_1 = arith.constant 0 : i32
    return %c0_i32, %c0_i32_0 : i32, i32
  }
  func.func @transform_5(%arg0: i32) -> (i32, i32) {
    %c0_i32 = arith.constant 0 : i32
    %c0_i32_0 = arith.constant 0 : i32
    %c0_i32_1 = arith.constant 0 : i32
    return %c0_i32, %c0_i32_0 : i32, i32
  }
  func.func @transform_6(%arg0: i32) -> (i32, i32) {
    %c0_i32 = arith.constant 0 : i32
    %c0_i32_0 = arith.constant 0 : i32
    return %arg0, %c0_i32 : i32, i32
  }
}

</mosaic_0001>

<llo_original>
// kernel: tpu_custom_call.1
$region0: #{tpu_custom_call.1}
  #allocation0 [shape = 'u32[]', space=smem, size = 0x4, offset = 0x4, fixed_abs, tag = 'smem constant byte address 0x4 - core index']
  #allocation1 [shape = 'u32[72,128]{1,0:T(1,128)}', space=vmem, size = 0x9000, scoped, tag = 'internal scratch']
  %s0 = inlined_call_operand.vmem [shape: s32[64,1], index: 0, kind: input, shape index: {}]
  %s1 = inlined_call_operand.hbm [shape: f32[128,128], index: 1, kind: input, shape index: {}]
  %s2 = inlined_call_operand.hbm [shape: f32[128,128], index: 2, kind: input, shape index: {}]
  %s3 = inlined_call_operand.vmem [shape: f32[1,128], index: 3, kind: input, shape index: {}]
  %s4 = inlined_call_operand.hbm [shape: f32[128,128], index: 4, kind: input, shape index: {}]
  %s5 = inlined_call_operand.vmem [shape: f32[1,128], index: 5, kind: input, shape index: {}]
  %s6 = inlined_call_operand.hbm [shape: f32[8,128], index: 6, kind: output, shape index: {}]
  %s7 = sld [smem:[#allocation0]]
  $region46: #{tpu_custom_call.1} parent=0
    _
  %s9 = ssub.s32 1, %s7
  %s10 = scalar_select 0, %s9, %s7
  $region1: #{tpu_custom_call.1} parent=0
    #allocation2 [shape = 'u8[65536]{0}', space=vmem, size = 0x10000, scoped, tag = 'input window, operand 1, single buffered']
    #allocation3 [shape = 's32[1]{0}', space=sflag, size = 0x4, scoped, tag = 'scoped memory for tpu_custom_call.1']
    #allocation4 [shape = 's32[1]{0}', space=sflag, size = 0x4, scoped, tag = 'scoped memory for tpu_custom_call.1']
    #allocation5 [shape = 'u8[65536]{0}', space=vmem, size = 0x10000, scoped, tag = 'input window, operand 2, single buffered']
    #allocation6 [shape = 's32[1]{0}', space=sflag, size = 0x4, scoped, tag = 'scoped memory for tpu_custom_call.1']
    #allocation7 [shape = 'u8[65536]{0}', space=vmem, size = 0x10000, scoped, tag = 'input window, operand 4, single buffered']
    #allocation8 [shape = 'u8[4096]{0}', space=vmem, size = 0x1000, scoped, tag = 'output window, operand 0, single buffered']
    %11 = vsyncpa [#allocation3], 0
    %12 = vsyncpa [#allocation6], 0
    %13 = vsyncpa [#allocation4], 0
    // Predicated region
    $region2: #{tpu_custom_call.1} parent=1 // pred_check
      _
    $region3: #{tpu_custom_call.1} parent=1 // pred_check_branch
      %15 = sbr.rel (0) target = $region5
    $region4: #{tpu_custom_call.1} parent=1 // pred_region
      _
    $region5: #{tpu_custom_call.1} parent=1 // pred_fallthru
      _
    // Predicated region
    $region6: #{tpu_custom_call.1} parent=1 // pred_check
      _
    $region7: #{tpu_custom_call.1} parent=1 // pred_check_branch
      %17 = sbr.rel (0) target = $region9
    $region8: #{tpu_custom_call.1} parent=1 // pred_region
      %19 = vsyncadd [#allocation3], 0
      %s20 = sshll.u32 %s1, 4
      %s21 = int_to_ptr.hbm [resolvable:$true] %s20
      %s22 = sshll.u32 [#allocation2], 4
      %s23 = int_to_ptr.vmem [resolvable:$true] %s22
      %28 = dma.hbm_to_vmem [thread:$0]  %s21, 2048, %s23, [#allocation3], 128, 128, 8
    $region9: #{tpu_custom_call.1} parent=1 // pred_fallthru
      _
    // Predicated region
    $region10: #{tpu_custom_call.1} parent=1 // pred_check
      _
    $region11: #{tpu_custom_call.1} parent=1 // pred_check_branch
      %30 = sbr.rel (0) target = $region13
    $region12: #{tpu_custom_call.1} parent=1 // pred_region
      %32 = vsyncadd [#allocation6], 0
      %s33 = sshll.u32 %s2, 4
      %s34 = int_to_ptr.hbm [resolvable:$true] %s33
      %s35 = sshll.u32 [#allocation5], 4
      %s36 = int_to_ptr.vmem [resolvable:$true] %s35
      %41 = dma.hbm_to_vmem [thread:$0]  %s34, 2048, %s36, [#allocation6], 128, 128, 8
    $region13: #{tpu_custom_call.1} parent=1 // pred_fallthru
      _
    // Predicated region
    $region14: #{tpu_custom_call.1} parent=1 // pred_check
      _
    $region15: #{tpu_custom_call.1} parent=1 // pred_check_branch
      %43 = sbr.rel (0) target = $region17
    $region16: #{tpu_custom_call.1} parent=1 // pred_region
      _
    $region17: #{tpu_custom_call.1} parent=1 // pred_fallthru
      _
    // Predicated region
    $region18: #{tpu_custom_call.1} parent=1 // pred_check
      _
    $region19: #{tpu_custom_call.1} parent=1 // pred_check_branch
      %45 = sbr.rel (0) target = $region21
    $region20: #{tpu_custom_call.1} parent=1 // pred_region
      %47 = vsyncadd [#allocation6], 0
      %s48 = sshll.u32 %s4, 4
      %s49 = int_to_ptr.hbm [resolvable:$true] %s48
      %s50 = sshll.u32 [#allocation7], 4
      %s51 = int_to_ptr.vmem [resolvable:$true] %s50
      %56 = dma.hbm_to_vmem [thread:$0]  %s49, 2048, %s51, [#allocation6], 128, 128, 8
    $region21: #{tpu_custom_call.1} parent=1 // pred_fallthru
      _
    // Predicated region
    $region22: #{tpu_custom_call.1} parent=1 // pred_check
      _
    $region23: #{tpu_custom_call.1} parent=1 // pred_check_branch
      %58 = sbr.rel (0) target = $region25
    $region24: #{tpu_custom_call.1} parent=1 // pred_region
      _
    $region25: #{tpu_custom_call.1} parent=1 // pred_fallthru
      _
    // Predicated region
    $region26: #{tpu_custom_call.1} parent=1 // pred_check
      _
    $region27: #{tpu_custom_call.1} parent=1 // pred_check_branch
      %60 = sbr.rel (0) target = $region29
    $region28: #{tpu_custom_call.1} parent=1 // pred_region
      %62 = dma.done [#allocation3], 2048
    $region29: #{tpu_custom_call.1} parent=1 // pred_fallthru
      _
    // Predicated region
    $region30: #{tpu_custom_call.1} parent=1 // pred_check
      _
    $region31: #{tpu_custom_call.1} parent=1 // pred_check_branch
      %64 = sbr.rel (0) target = $region33
    $region32: #{tpu_custom_call.1} parent=1 // pred_region
      %66 = dma.done [#allocation6], 2048
    $region33: #{tpu_custom_call.1} parent=1 // pred_fallthru
      _
    // Predicated region
    $region34: #{tpu_custom_call.1} parent=1 // pred_check
      _
    $region35: #{tpu_custom_call.1} parent=1 // pred_check_branch
      %68 = sbr.rel (0) target = $region37
    $region36: #{tpu_custom_call.1} parent=1 // pred_region
      %70 = dma.done [#allocation6], 2048
    $region37: #{tpu_custom_call.1} parent=1 // pred_fallthru
      _
    %v71 = vld [vmem:[%s0] sm:$0xff]
    %v72 = vld [vmem:[%s0 + $0x8] sm:$0xff]
    %v73 = vld [vmem:[%s0 + $0x10] sm:$0xff]
    %v74 = vld [vmem:[%s0 + $0x18] sm:$0xff]
    %v75 = vld [vmem:[%s0 + $0x20] sm:$0xff]
    %v76 = vld [vmem:[%s0 + $0x28] sm:$0xff]
    %v77 = vld [vmem:[%s0 + $0x30] sm:$0xff]
    %v78 = vld [vmem:[%s0 + $0x38] sm:$0xff]
    %v79 = vlaneseq
    %v80 = vand.u32 %v79, 127
    %81 = vset.pattern.permute.xlu0 0
    %82 = vperm.xlu0 %81, %v71
    %v83 = vpop.permute.xlu0 %82
    %84 = vset.pattern.permute.xlu0 0
    %85 = vperm.xlu0 %84, %v72
    %v86 = vpop.permute.xlu0 %85
    %87 = vset.pattern.permute.xlu0 0
    %88 = vperm.xlu0 %87, %v73
    %v89 = vpop.permute.xlu0 %88
    %90 = vset.pattern.permute.xlu0 0
    %91 = vperm.xlu0 %90, %v74
    %v92 = vpop.permute.xlu0 %91
    %93 = vset.pattern.permute.xlu0 0
    %94 = vperm.xlu0 %93, %v75
    %v95 = vpop.permute.xlu0 %94
    %96 = vset.pattern.permute.xlu0 0
    %97 = vperm.xlu0 %96, %v76
    %v98 = vpop.permute.xlu0 %97
    %99 = vset.pattern.permute.xlu0 0
    %100 = vperm.xlu0 %99, %v77
    %v101 = vpop.permute.xlu0 %100
    %102 = vset.pattern.permute.xlu0 0
    %103 = vperm.xlu0 %102, %v78
    %v104 = vpop.permute.xlu0 %103
    %vm105 = vcmp.eq.s32.totalorder %v80, %v83
    %vm106 = vcmp.eq.s32.totalorder %v80, %v86
    %vm107 = vcmp.eq.s32.totalorder %v80, %v89
    %vm108 = vcmp.eq.s32.totalorder %v80, %v92
    %vm109 = vcmp.eq.s32.totalorder %v80, %v95
    %vm110 = vcmp.eq.s32.totalorder %v80, %v98
    %vm111 = vcmp.eq.s32.totalorder %v80, %v101
    %vm112 = vcmp.eq.s32.totalorder %v80, %v104
    %v113 = vsel %vm105, 1, 0
    %v114 = vsel %vm106, 1, 0
    %v115 = vsel %vm107, 1, 0
    %v116 = vsel %vm108, 1, 0
    %v117 = vsel %vm109, 1, 0
    %v118 = vsel %vm110, 1, 0
    %v119 = vsel %vm111, 1, 0
    %v120 = vsel %vm112, 1, 0
    %v121 = vcvt.s32.f32 %v113
    %v122 = vcvt.s32.f32 %v114
    %v123 = vcvt.s32.f32 %v115
    %v124 = vcvt.s32.f32 %v116
    %v125 = vcvt.s32.f32 %v117
    %v126 = vcvt.s32.f32 %v118
    %v127 = vcvt.s32.f32 %v119
    %v128 = vcvt.s32.f32 %v120
    %v129 = vld [vmem:[#allocation2] sm:$0xff]
    %v130 = vld [vmem:[#allocation2 + $0x8] sm:$0xff]
    %v131 = vld [vmem:[#allocation2 + $0x10] sm:$0xff]
    %v132 = vld [vmem:[#allocation2 + $0x18] sm:$0xff]
    %v133 = vld [vmem:[#allocation2 + $0x20] sm:$0xff]
    %v134 = vld [vmem:[#allocation2 + $0x28] sm:$0xff]
    %v135 = vld [vmem:[#allocation2 + $0x30] sm:$0xff]
    %v136 = vld [vmem:[#allocation2 + $0x38] sm:$0xff]
    %v137 = vld [vmem:[#allocation2 + $0x40] sm:$0xff]
    %v138 = vld [vmem:[#allocation2 + $0x48] sm:$0xff]
    %v139 = vld [vmem:[#allocation2 + $0x50] sm:$0xff]
    %v140 = vld [vmem:[#allocation2 + $0x58] sm:$0xff]
    %v141 = vld [vmem:[#allocation2 + $0x60] sm:$0xff]
    %v142 = vld [vmem:[#allocation2 + $0x68] sm:$0xff]
    %v143 = vld [vmem:[#allocation2 + $0x70] sm:$0xff]
    %v144 = vld [vmem:[#allocation2 + $0x78] sm:$0xff]
    %145 = vmatpush.msra.mxu0 %v144
    %146 = vmatpush.msra.mxu0 %v143
    %147 = vmatpush.msra.mxu0 %v142
    %148 = vmatpush.msra.mxu0 %v141
    %149 = vmatpush.msra.mxu0 %v140
    %150 = vmatpush.msra.mxu0 %v139
    %151 = vmatpush.msra.mxu0 %v138
    %152 = vmatpush.msra.mxu0 %v137
    %153 = vmatpush.msra.mxu0 %v136
    %154 = vmatpush.msra.mxu0 %v135
    %155 = vmatpush.msra.mxu0 %v134
    %156 = vmatpush.msra.mxu0 %v133
    %157 = vmatpush.msra.mxu0 %v132
    %158 = vmatpush.msra.mxu0 %v131
    %159 = vmatpush.msra.mxu0 %v130
    %160 = vmatpush.msra.mxu0 %v129
    %161 = vmatmul.f32.gmra.mxu0 %v121
    %v162 = vpop.f32.mrf.mxu0
    %v163 = vadd.f32 0.0, %v162
    %164 = vmatmul.f32.gmra.mxu0 %v122
    %v165 = vpop.f32.mrf.mxu0
    %v166 = vadd.f32 0.0, %v165
    %167 = vmatmul.f32.gmra.mxu0 %v123
    %v168 = vpop.f32.mrf.mxu0
    %v169 = vadd.f32 0.0, %v168
    %170 = vmatmul.f32.gmra.mxu0 %v124
    %v171 = vpop.f32.mrf.mxu0
    %v172 = vadd.f32 0.0, %v171
    %173 = vmatmul.f32.gmra.mxu0 %v125
    %v174 = vpop.f32.mrf.mxu0
    %v175 = vadd.f32 0.0, %v174
    %176 = vmatmul.f32.gmra.mxu0 %v126
    %v177 = vpop.f32.mrf.mxu0
    %v178 = vadd.f32 0.0, %v177
    %179 = vmatmul.f32.gmra.mxu0 %v127
    %v180 = vpop.f32.mrf.mxu0
    %v181 = vadd.f32 0.0, %v180
    %182 = vmatmul.f32.gmra.mxu0 %v128
    %v183 = vpop.f32.mrf.mxu0
    %v184 = vadd.f32 0.0, %v183
    %185 = vdwg.mxu0
    %v186 = vrot.slane %v163, 4
    %v187 = vmax.f32 %v163, %v186
    %v188 = vrot.slane %v187, 2
    %v189 = vmax.f32 %v187, %v188
    %v190 = vrot.slane %v189, 1
    %v191 = vmax.f32 %v189, %v190
    %v192 = vrot.slane %v166, 4
    %v193 = vmax.f32 %v166, %v192
    %v194 = vrot.slane %v193, 2
    %v195 = vmax.f32 %v193, %v194
    %v196 = vrot.slane %v195, 1
    %v197 = vmax.f32 %v195, %v196
    %v198 = vrot.slane %v169, 4
    %v199 = vmax.f32 %v169, %v198
    %v200 = vrot.slane %v199, 2
    %v201 = vmax.f32 %v199, %v200
    %v202 = vrot.slane %v201, 1
    %v203 = vmax.f32 %v201, %v202
    %v204 = vrot.slane %v172, 4
    %v205 = vmax.f32 %v172, %v204
    %v206 = vrot.slane %v205, 2
    %v207 = vmax.f32 %v205, %v206
    %v208 = vrot.slane %v207, 1
    %v209 = vmax.f32 %v207, %v208
    %v210 = vrot.slane %v175, 4
    %v211 = vmax.f32 %v175, %v210
    %v212 = vrot.slane %v211, 2
    %v213 = vmax.f32 %v211, %v212
    %v214 = vrot.slane %v213, 1
    %v215 = vmax.f32 %v213, %v214
    %v216 = vrot.slane %v178, 4
    %v217 = vmax.f32 %v178, %v216
    %v218 = vrot.slane %v217, 2
    %v219 = vmax.f32 %v217, %v218
    %v220 = vrot.slane %v219, 1
    %v221 = vmax.f32 %v219, %v220
    %v222 = vrot.slane %v181, 4
    %v223 = vmax.f32 %v181, %v222
    %v224 = vrot.slane %v223, 2
    %v225 = vmax.f32 %v223, %v224
    %v226 = vrot.slane %v225, 1
    %v227 = vmax.f32 %v225, %v226
    %v228 = vrot.slane %v184, 4
    %v229 = vmax.f32 %v184, %v228
    %v230 = vrot.slane %v229, 2
    %v231 = vmax.f32 %v229, %v230
    %v232 = vrot.slane %v231, 1
    %v233 = vmax.f32 %v231, %v232
    %v234 = vld [vmem:[#allocation5] sm:$0xff]
    %v235 = vld [vmem:[#allocation5 + $0x8] sm:$0xff]
    %v236 = vld [vmem:[#allocation5 + $0x10] sm:$0xff]
    %v237 = vld [vmem:[#allocation5 + $0x18] sm:$0xff]
    %v238 = vld [vmem:[#allocation5 + $0x20] sm:$0xff]
    %v239 = vld [vmem:[#allocation5 + $0x28] sm:$0xff]
    %v240 = vld [vmem:[#allocation5 + $0x30] sm:$0xff]
    %v241 = vld [vmem:[#allocation5 + $0x38] sm:$0xff]
    %v242 = vld [vmem:[#allocation5 + $0x40] sm:$0xff]
    %v243 = vld [vmem:[#allocation5 + $0x48] sm:$0xff]
    %v244 = vld [vmem:[#allocation5 + $0x50] sm:$0xff]
    %v245 = vld [vmem:[#allocation5 + $0x58] sm:$0xff]
    %v246 = vld [vmem:[#allocation5 + $0x60] sm:$0xff]
    %v247 = vld [vmem:[#allocation5 + $0x68] sm:$0xff]
    %v248 = vld [vmem:[#allocation5 + $0x70] sm:$0xff]
    %v249 = vld [vmem:[#allocation5 + $0x78] sm:$0xff]
    %v250 = vld [vmem:[%s3] sm:$0x1]
    %v252 = vperm.slane %v250, 0
    %vm262 = vcmask 1041409
    %v263 = vsel %vm262, %v197, %v191
    %vm264 = vcmask 1042434
    %v265 = vsel %vm264, %v203, %v263
    %vm266 = vcmask 1043459
    %v267 = vsel %vm266, %v209, %v265
    %vm268 = vcmask 1044484
    %v269 = vsel %vm268, %v215, %v267
    %vm270 = vcmask 1045509
    %v271 = vsel %vm270, %v221, %v269
    %vm272 = vcmask 1046534
    %v273 = vsel %vm272, %v227, %v271
    %vm274 = vcmask 1047559
    %v275 = vsel %vm274, %v233, %v273
    %277 = vmatpush.msra.mxu0 %v249
    %278 = vmatpush.msra.mxu0 %v248
    %279 = vmatpush.msra.mxu0 %v247
    %280 = vmatpush.msra.mxu0 %v246
    %281 = vmatpush.msra.mxu0 %v245
    %282 = vmatpush.msra.mxu0 %v244
    %283 = vmatpush.msra.mxu0 %v243
    %284 = vmatpush.msra.mxu0 %v242
    %285 = vmatpush.msra.mxu0 %v241
    %286 = vmatpush.msra.mxu0 %v240
    %287 = vmatpush.msra.mxu0 %v239
    %288 = vmatpush.msra.mxu0 %v238
    %289 = vmatpush.msra.mxu0 %v237
    %290 = vmatpush.msra.mxu0 %v236
    %291 = vmatpush.msra.mxu0 %v235
    %292 = vmatpush.msra.mxu0 %v234
    %293 = vmatmul.f32.gmra.mxu0 %v275
    %v294 = vpop.f32.mrf.mxu0
    %v295 = vadd.f32 %v252, %v294
    %296 = vdwg.mxu0
    %v297 = vmax.f32 %v295, 0.0
    %v298 = vld [vmem:[#allocation7] sm:$0xff]
    %v299 = vld [vmem:[#allocation7 + $0x8] sm:$0xff]
    %v300 = vld [vmem:[#allocation7 + $0x10] sm:$0xff]
    %v301 = vld [vmem:[#allocation7 + $0x18] sm:$0xff]
    %v302 = vld [vmem:[#allocation7 + $0x20] sm:$0xff]
    %v303 = vld [vmem:[#allocation7 + $0x28] sm:$0xff]
    %v304 = vld [vmem:[#allocation7 + $0x30] sm:$0xff]
    %v305 = vld [vmem:[#allocation7 + $0x38] sm:$0xff]
    %v306 = vld [vmem:[#allocation7 + $0x40] sm:$0xff]
    %v307 = vld [vmem:[#allocation7 + $0x48] sm:$0xff]
    %v308 = vld [vmem:[#allocation7 + $0x50] sm:$0xff]
    %v309 = vld [vmem:[#allocation7 + $0x58] sm:$0xff]
    %v310 = vld [vmem:[#allocation7 + $0x60] sm:$0xff]
    %v311 = vld [vmem:[#allocation7 + $0x68] sm:$0xff]
    %v312 = vld [vmem:[#allocation7 + $0x70] sm:$0xff]
    %v313 = vld [vmem:[#allocation7 + $0x78] sm:$0xff]
    %v314 = vld [vmem:[%s5] sm:$0x1]
    %v316 = vperm.slane %v314, 0
    %318 = vmatpush.msra.mxu0 %v313
    %319 = vmatpush.msra.mxu0 %v312
    %320 = vmatpush.msra.mxu0 %v311
    %321 = vmatpush.msra.mxu0 %v310
    %322 = vmatpush.msra.mxu0 %v309
    %323 = vmatpush.msra.mxu0 %v308
    %324 = vmatpush.msra.mxu0 %v307
    %325 = vmatpush.msra.mxu0 %v306
    %326 = vmatpush.msra.mxu0 %v305
    %327 = vmatpush.msra.mxu0 %v304
    %328 = vmatpush.msra.mxu0 %v303
    %329 = vmatpush.msra.mxu0 %v302
    %330 = vmatpush.msra.mxu0 %v301
    %331 = vmatpush.msra.mxu0 %v300
    %332 = vmatpush.msra.mxu0 %v299
    %333 = vmatpush.msra.mxu0 %v298
    %334 = vmatmul.f32.gmra.mxu0 %v297
    %v335 = vpop.f32.mrf.mxu0
    %v336 = vadd.f32 %v316, %v335
    %337 = vdwg.mxu0
    %v338 = vmax.f32 %v336, 0.0
    %339 = vst [vmem:[#allocation8] sm:$0xff] %v338
    // Predicated region
    $region38: #{tpu_custom_call.1} parent=1 // pred_check
      _
    $region39: #{tpu_custom_call.1} parent=1 // pred_check_branch
      %341 = sbr.rel (0) target = $region41
    $region40: #{tpu_custom_call.1} parent=1 // pred_region
      %343 = vsyncadd [#allocation4], 0
      %s345 = sshll.u32 [#allocation8], 4
      %s346 = int_to_ptr.vmem [resolvable:$true] %s345
      %s347 = sshll.u32 %s6, 4
      %s348 = int_to_ptr.hbm [resolvable:$true] %s347
      %350 = dma.vmem_to_hbm [thread:$0]  %s346, 128, %s348, [#allocation4]
    $region41: #{tpu_custom_call.1} parent=1 // pred_fallthru
      _
    // Predicated region
    $region42: #{tpu_custom_call.1} parent=1 // pred_check
      _
    $region43: #{tpu_custom_call.1} parent=1 // pred_check_branch
      %352 = sbr.rel (0) target = $region45
    $region44: #{tpu_custom_call.1} parent=1 // pred_region
      %354 = dma.done [#allocation4], 128
    $region45: #{tpu_custom_call.1} parent=1 // pred_fallthru
      _
    %355 = vsyncpa [#allocation3], 1
    %356 = vsyncpa [#allocation6], 1
    %357 = vsyncpa [#allocation4], 1

</llo_original>
